<compile_context>
chip_gen: v7x
topology: tpu7x:2x2x1
jax: 0.10.0
libtpu: 0.0.40
codegen_flags: <defaults>
</compile_context>

<pallas_src>
import functools

import jax
import jax.numpy as jnp
import numpy as np
from jax import lax
from jax.experimental import pallas as pl
from jax.experimental.pallas import tpu as pltpu

_VMEM_LIMIT = 48 * 1024 * 1024        # safe on all generations (v7x: 64 MiB physical)
_TILE_TARGET_BYTES = 4 * 1024 * 1024  # ~4 MiB x tile -> ~16 MiB of streaming buffers
_FUSED_X_BYTES_MAX = 4 * 1024 * 1024  # single-pass path when the f32 copy of x is small


# ------------------------------- kernels ------------------------------------

def _stats_kernel(x_ref, sum_ref, sq_ref):
    """Per-(n, channel-tile) partial sum / sum-of-squares over the HW (lane) axis.
    Output blocks are resident across the HW grid axis and act as accumulators."""
    ht = pl.program_id(2)

    @pl.when(ht == 0)
    def _():
        sum_ref[...] = jnp.zeros_like(sum_ref)
        sq_ref[...] = jnp.zeros_like(sq_ref)

    xt = x_ref[...].astype(jnp.float32)                      # (1, c_tile, hw_tile)
    sum_ref[...] += jnp.sum(xt, axis=-1, keepdims=True)      # (1, c_tile, 1)
    sq_ref[...] += jnp.sum(xt * xt, axis=-1, keepdims=True)  # (1, c_tile, 1)


def _apply_kernel(x_ref, scale_ref, shift_ref, o_ref):
    """out = x * scale + shift with per-(n, channel) scale/shift."""
    xt = x_ref[...].astype(jnp.float32)                      # (1, c_tile, hw_tile)
    o_ref[...] = (xt * scale_ref[...] + shift_ref[...]).astype(o_ref.dtype)


def _fused_kernel(x_ref, gain_ref, bias_ref, o_ref, *, eps, count):
    """Single-pass path (x fully resident in VMEM): stats + normalize + affine."""
    x = x_ref[...].astype(jnp.float32)                       # (N, C, HW)
    s = jnp.sum(x, axis=2, keepdims=True)                    # (N, C, 1)  lane reduce
    sq = jnp.sum(x * x, axis=2, keepdims=True)               # (N, C, 1)
    s = jnp.sum(s, axis=0, keepdims=True)                    # (1, C, 1)
    sq = jnp.sum(sq, axis=0, keepdims=True)                  # (1, C, 1)
    inv_count = 1.0 / count                                  # static
    m = s * inv_count
    var = jnp.maximum(sq * inv_count - m * m, 0.0)           # cancellation guard
    inv_std = lax.rsqrt(var + eps)
    scale = inv_std * gain_ref[...]                          # (N, C, 1)
    shift = bias_ref[...] - m * scale                        # (N, C, 1)
    o_ref[...] = (x * scale + shift).astype(o_ref.dtype)


# ----------------------------- tile selection --------------------------------

def _divisor_tile(total, unit, limit):
    """Largest multiple of `unit` that divides `total` and is <= `limit`.
    Falls back to `total` (full extent is always a legal block dim)."""
    if total <= limit:
        return total
    t = (min(total, limit) // unit) * unit
    while t >= unit:
        if total % t == 0:
            return t
        t -= unit
    # TODO(synk): no aligned divisor -> full extent; for pathological huge
    #             non-power-of-two dims this could exceed the VMEM budget.
    return total


def _pick_tiles(c, hw, itemsize, target_bytes=_TILE_TARGET_BYTES):
    """~`target_bytes` x tiles: lane-dense HW tile (multiple of 128 or full),
    channel tile a multiple of 8 (sublane) or full C."""
    max_hw = max(128, target_bytes // max(1, 8 * itemsize))
    hw_tile = _divisor_tile(hw, 128, max_hw)
    max_c = max(8, target_bytes // max(1, hw_tile * itemsize))
    c_tile = _divisor_tile(c, 8, max_c)
    return c_tile, hw_tile


# --------------------------------- wrapper -----------------------------------

def ccbn_forward(x_nchw, y, wg, bg, wb, bb, *, eps=1e-5,
                 c_tile=None, hw_tile=None, force_two_pass=False):
    """ccbn forward (training-mode batch norm + class-conditional affine).

    x: (N, C, H, W); y: (N, Z); wg/wb: (Z, C) linear weights (transpose of
    torch's (out, in) layout so the wrapper does y @ W); bg/bb: (C,)."""
    N, C, H, W = x_nchw.shape
    HW = H * W
    x3 = x_nchw.reshape(N, C, HW)          # free reshape: NCHW is contiguous
    count = float(N * HW)

    # Conditional gain/bias: tiny matmuls, hoisted to XLA (would underfill MXU).
    yf = y.astype(jnp.float32)
    gain = 1.0 + yf @ wg.astype(jnp.float32) + bg.astype(jnp.float32)   # (N, C)
    bias = yf @ wb.astype(jnp.float32) + bb.astype(jnp.float32)         # (N, C)

    itemsize = jnp.dtype(x_nchw.dtype).itemsize
    x_bytes_f32 = N * C * HW * 4

    if (not force_two_pass) and x_bytes_f32 <= _FUSED_X_BYTES_MAX:
        # ---------- single-pass fused path: 1 read + 1 write of x -----------
        out3 = pl.pallas_call(
            functools.partial(_fused_kernel, eps=eps, count=count),
            out_shape=jax.ShapeDtypeStruct((N, C, HW), x_nchw.dtype),
            grid=(1,),
            in_specs=[
                pl.BlockSpec((N, C, HW), lambda i: (0, 0, 0)),   # x (resident)
                pl.BlockSpec((N, C, 1), lambda i: (0, 0, 0)),    # gain
                pl.BlockSpec((N, C, 1), lambda i: (0, 0, 0)),    # bias
            ],
            out_specs=pl.BlockSpec((N, C, HW), lambda i: (0, 0, 0)),
            compiler_params=pltpu.CompilerParams(
                dimension_semantics=("arbitrary",),
                vmem_limit_bytes=_VMEM_LIMIT),
        )(x3, gain[:, :, None], bias[:, :, None])
        return out3.reshape(N, C, H, W)

    # -------------- two-pass tiled path: 2 reads + 1 write of x -------------
    if c_tile is None or hw_tile is None:
        ct_auto, ht_auto = _pick_tiles(C, HW, itemsize)
        c_tile = ct_auto if c_tile is None else c_tile
        hw_tile = ht_auto if hw_tile is None else hw_tile
    assert C % c_tile == 0 and HW % hw_tile == 0, (C, c_tile, HW, hw_tile)
    grid = (N, C // c_tile, HW // hw_tile)

    x_spec = pl.BlockSpec((1, c_tile, hw_tile), lambda n, ct, ht: (n, ct, ht))
    nc_spec = pl.BlockSpec((1, c_tile, 1), lambda n, ct, ht: (n, ct, 0))

    # pass 1: per-(n, channel-tile) partial sums; N/C axes parallel (v7x megacore)
    psum, psq = pl.pallas_call(
        _stats_kernel,
        out_shape=(jax.ShapeDtypeStruct((N, C, 1), jnp.float32),
                   jax.ShapeDtypeStruct((N, C, 1), jnp.float32)),
        grid=grid,
        in_specs=[x_spec],
        out_specs=(nc_spec, nc_spec),
        compiler_params=pltpu.CompilerParams(
            dimension_semantics=("parallel", "parallel", "arbitrary"),
            vmem_limit_bytes=_VMEM_LIMIT),
    )(x3)

    # Tiny finalize in XLA: per-channel mean / inv_std, then fold gain/bias into
    # per-(n, c) scale/shift so pass 2 is a single FMA per element.
    mean = jnp.sum(psum[..., 0], axis=0) / count                         # (C,)
    var = jnp.maximum(jnp.sum(psq[..., 0], axis=0) / count - mean * mean, 0.0)
    inv_std = lax.rsqrt(var + eps)                                       # (C,)
    scale = gain * inv_std[None, :]                                      # (N, C)
    shift = bias - mean[None, :] * scale                                 # (N, C)

    # pass 2: out = x * scale + shift, streamed over x tiles, fully parallel
    out3 = pl.pallas_call(
        _apply_kernel,
        out_shape=jax.ShapeDtypeStruct((N, C, HW), x_nchw.dtype),
        grid=grid,
        in_specs=[x_spec, nc_spec, nc_spec],
        out_specs=x_spec,
        compiler_params=pltpu.CompilerParams(
            dimension_semantics=("parallel", "parallel", "parallel"),
            vmem_limit_bytes=_VMEM_LIMIT),
    )(x3, scale[:, :, None], shift[:, :, None])
    return out3.reshape(N, C, H, W)


def ccbn_reference(x_nchw, y, wg, bg, wb, bb, *, eps=1e-5):
    """Pure-JAX reference for verification (mirrors the PyTorch module)."""
    gain = 1.0 + y @ wg + bg                                   # (N, C)
    bias = y @ wb + bb                                         # (N, C)
    m = jnp.mean(x_nchw, axis=(0, 2, 3), keepdims=True)
    var = jnp.mean(x_nchw ** 2, axis=(0, 2, 3), keepdims=True) - m ** 2
    xhat = (x_nchw - m) * lax.rsqrt(var + eps)
    return xhat * gain[:, :, None, None] + bias[:, :, None, None]


if __name__ == "__main__":
    # ccbn(output_size=C, input_size=Z, which_linear=nn.Linear)
    N, C, H, W = 2, 4, 16, 16          # x: NCHW activations
    Z = 32                             # conditioning vector size

    key = jax.random.PRNGKey(0)
    kx, ky, kwg, kbg, kwb, kbb = jax.random.split(key, 6)

    x = jax.random.normal(kx, (N, C, H, W), dtype=jnp.float32)
    y = jax.random.normal(ky, (N, Z), dtype=jnp.float32)

    # Deterministic synthetic Linear params, stored as (in, out) = transpose of
    # torch's (out, in) weight so the wrapper does y @ W directly.
    bound = 1.0 / np.sqrt(Z)
    wg = jax.random.uniform(kwg, (Z, C), minval=-bound, maxval=bound, dtype=jnp.float32)
    bg = jax.random.uniform(kbg, (C,), minval=-bound, maxval=bound, dtype=jnp.float32)
    wb = jax.random.uniform(kwb, (Z, C), minval=-bound, maxval=bound, dtype=jnp.float32)
    bb = jax.random.uniform(kbb, (C,), minval=-bound, maxval=bound, dtype=jnp.float32)

    ref = jax.block_until_ready(ccbn_reference(x, y, wg, bg, wb, bb))

    # 1) single-pass fused path (x fits in VMEM -> 1 read + 1 write of x).
    out_fused = jax.block_until_ready(ccbn_forward(x, y, wg, bg, wb, bb))
    assert out_fused.shape == (N, C, H, W)
    np.testing.assert_allclose(np.asarray(out_fused), np.asarray(ref),
                               rtol=1e-4, atol=1e-4)

    # 2) two-pass tiled path with a forced multi-step HW grid (2 lane-dense
    #    tiles of 128) so the pl.when accumulator/finalize logic is exercised.
    out_tiled = jax.block_until_ready(
        ccbn_forward(x, y, wg, bg, wb, bb, force_two_pass=True, hw_tile=128))
    np.testing.assert_allclose(np.asarray(out_tiled), np.asarray(ref),
                               rtol=1e-4, atol=1e-4)

    print("KERNEL_OK")
</pallas_src>

<mosaic_0001>
module attributes {stable_mosaic.version = 11 : i64} {
  func.func @_fused_kernel(%arg0: i32, %arg1: memref<2x4x256xf32, #tpu.memory_space<vmem>>, %arg2: memref<2x4x1xf32, #tpu.memory_space<vmem>>, %arg3: memref<2x4x1xf32, #tpu.memory_space<vmem>>, %arg4: memref<2x4x256xf32, #tpu.memory_space<vmem>>) attributes {dimension_semantics = [#tpu.dimension_semantics<arbitrary>], iteration_bounds = array<i64: 1>, scalar_prefetch = 0 : i64, scratch_operands = 0 : i64, tpu.core_type = #tpu.core_type<tc>, window_params = [{pipeline_mode = #tpu.pipeline_mode<synchronous>, transform_indices = @transform_0, window_bounds = array<i64: 2, 4, 256>}, {pipeline_mode = #tpu.pipeline_mode<synchronous>, transform_indices = @transform_1, window_bounds = array<i64: 2, 4, 1>}, {pipeline_mode = #tpu.pipeline_mode<synchronous>, transform_indices = @transform_2, window_bounds = array<i64: 2, 4, 1>}, {pipeline_mode = #tpu.pipeline_mode<synchronous>, transform_indices = @transform_3, window_bounds = array<i64: 2, 4, 256>}]} {
    %c0 = arith.constant 0 : index
    %c0_0 = arith.constant 0 : index
    %c0_1 = arith.constant 0 : index
    %0 = vector.load %arg1[%c0, %c0_0, %c0_1] : memref<2x4x256xf32, #tpu.memory_space<vmem>>, vector<2x4x256xf32>
    %cst = arith.constant dense<0.000000e+00> : vector<2x4xf32>
    %1 = vector.multi_reduction <add>, %0, %cst [2] : vector<2x4x256xf32> to vector<2x4xf32>
    %2 = vector.shape_cast %1 : vector<2x4xf32> to vector<2x4x1xf32>
    %3 = arith.mulf %0, %0 : vector<2x4x256xf32>
    %cst_2 = arith.constant dense<0.000000e+00> : vector<2x4xf32>
    %4 = vector.multi_reduction <add>, %3, %cst_2 [2] : vector<2x4x256xf32> to vector<2x4xf32>
    %5 = vector.shape_cast %4 : vector<2x4xf32> to vector<2x4x1xf32>
    %cst_3 = arith.constant dense<0.000000e+00> : vector<4x1xf32>
    %6 = vector.multi_reduction <add>, %2, %cst_3 [0] : vector<2x4x1xf32> to vector<4x1xf32>
    %7 = vector.shape_cast %6 : vector<4x1xf32> to vector<1x4x1xf32>
    %cst_4 = arith.constant dense<0.000000e+00> : vector<4x1xf32>
    %8 = vector.multi_reduction <add>, %5, %cst_4 [0] : vector<2x4x1xf32> to vector<4x1xf32>
    %9 = vector.shape_cast %8 : vector<4x1xf32> to vector<1x4x1xf32>
    %cst_5 = arith.constant 0.001953125 : f32
    %10 = vector.broadcast %cst_5 : f32 to vector<1x4x1xf32>
    %11 = arith.mulf %7, %10 : vector<1x4x1xf32>
    %cst_6 = arith.constant 0.001953125 : f32
    %12 = vector.broadcast %cst_6 : f32 to vector<1x4x1xf32>
    %13 = arith.mulf %9, %12 : vector<1x4x1xf32>
    %14 = arith.mulf %11, %11 : vector<1x4x1xf32>
    %15 = arith.subf %13, %14 : vector<1x4x1xf32>
    %cst_7 = arith.constant 0.000000e+00 : f32
    %16 = vector.broadcast %cst_7 : f32 to vector<1x4x1xf32>
    %17 = arith.maximumf %15, %16 : vector<1x4x1xf32>
    %cst_8 = arith.constant 9.99999974E-6 : f32
    %18 = vector.broadcast %cst_8 : f32 to vector<1x4x1xf32>
    %19 = arith.addf %17, %18 : vector<1x4x1xf32>
    %20 = math.rsqrt %19 : vector<1x4x1xf32>
    %c0_9 = arith.constant 0 : index
    %c0_10 = arith.constant 0 : index
    %c0_11 = arith.constant 0 : index
    %21 = vector.load %arg2[%c0_9, %c0_10, %c0_11] : memref<2x4x1xf32, #tpu.memory_space<vmem>>, vector<2x4x1xf32>
    %22 = vector.broadcast %20 : vector<1x4x1xf32> to vector<2x4x1xf32>
    %23 = arith.mulf %22, %21 : vector<2x4x1xf32>
    %c0_12 = arith.constant 0 : index
    %c0_13 = arith.constant 0 : index
    %c0_14 = arith.constant 0 : index
    %24 = vector.load %arg3[%c0_12, %c0_13, %c0_14] : memref<2x4x1xf32, #tpu.memory_space<vmem>>, vector<2x4x1xf32>
    %25 = vector.broadcast %11 : vector<1x4x1xf32> to vector<2x4x1xf32>
    %26 = arith.mulf %25, %23 : vector<2x4x1xf32>
    %27 = arith.subf %24, %26 : vector<2x4x1xf32>
    %28 = vector.broadcast %23 : vector<2x4x1xf32> to vector<2x4x256xf32>
    %29 = arith.mulf %0, %28 : vector<2x4x256xf32>
    %30 = vector.broadcast %27 : vector<2x4x1xf32> to vector<2x4x256xf32>
    %31 = arith.addf %29, %30 : vector<2x4x256xf32>
    %c0_15 = arith.constant 0 : index
    %c0_16 = arith.constant 0 : index
    %c0_17 = arith.constant 0 : index
    %32 = vector.load %arg4[%c0_15, %c0_16, %c0_17] : memref<2x4x256xf32, #tpu.memory_space<vmem>>, vector<2x4x256xf32>
    tpu.vector_store %arg4[%c0_15, %c0_16, %c0_17], %31 {strides = array<i32>} : memref<2x4x256xf32, #tpu.memory_space<vmem>>, vector<2x4x256xf32>,
    return
  }
  func.func @transform_0(%arg0: i32) -> (i32, i32, i32) {
    %c0_i32 = arith.constant 0 : i32
    %c0_i32_0 = arith.constant 0 : i32
    %c0_i32_1 = arith.constant 0 : i32
    %c0_i32_2 = arith.constant 0 : i32
    return %c0_i32, %c0_i32_0, %c0_i32_1 : i32, i32, i32
  }
  func.func @transform_1(%arg0: i32) -> (i32, i32, i32) {
    %c0_i32 = arith.constant 0 : i32
    %c0_i32_0 = arith.constant 0 : i32
    %c0_i32_1 = arith.constant 0 : i32
    %c0_i32_2 = arith.constant 0 : i32
    return %c0_i32, %c0_i32_0, %c0_i32_1 : i32, i32, i32
  }
  func.func @transform_2(%arg0: i32) -> (i32, i32, i32) {
    %c0_i32 = arith.constant 0 : i32
    %c0_i32_0 = arith.constant 0 : i32
    %c0_i32_1 = arith.constant 0 : i32
    %c0_i32_2 = arith.constant 0 : i32
    return %c0_i32, %c0_i32_0, %c0_i32_1 : i32, i32, i32
  }
  func.func @transform_3(%arg0: i32) -> (i32, i32, i32) {
    %c0_i32 = arith.constant 0 : i32
    %c0_i32_0 = arith.constant 0 : i32
    %c0_i32_1 = arith.constant 0 : i32
    %c0_i32_2 = arith.constant 0 : i32
    return %c0_i32, %c0_i32_0, %c0_i32_1 : i32, i32, i32
  }
}

</mosaic_0001>

<llo_original>
// kernel: tpu_custom_call.1
$region0: #{tpu_custom_call.1}
  #allocation0 [shape = 'u32[]', space=smem, size = 0x4, offset = 0x4, fixed_abs, tag = 'smem constant byte address 0x4 - core index']
  #allocation1 [shape = 'u32[144,128]{1,0:T(1,128)}', space=vmem, size = 0x12000, scoped, tag = 'internal scratch']
  %s0 = inlined_call_operand.vmem [shape: f32[2,4,256], index: 0, kind: input, shape index: {}]
  %s1 = inlined_call_operand.vmem [shape: f32[2,4,1], index: 1, kind: input, shape index: {}]
  %s2 = inlined_call_operand.vmem [shape: f32[2,4,1], index: 2, kind: input, shape index: {}]
  %s3 = inlined_call_operand.hbm [shape: f32[2,4,256], index: 3, kind: output, shape index: {}]
  %s4 = sld [smem:[#allocation0]]
  $region22: #{tpu_custom_call.1} parent=0
    _
  %s6 = ssub.s32 1, %s4
  %s7 = scalar_select 0, %s6, %s4
  $region1: #{tpu_custom_call.1} parent=0
    #allocation2 [shape = 'u8[8192]{0}', space=vmem, size = 0x2000, scoped, tag = 'output window, operand 0, single buffered']
    #allocation3 [shape = 's32[1]{0}', space=sflag, size = 0x4, scoped, tag = 'scoped memory for tpu_custom_call.1']
    %8 = vsyncpa [#allocation3], 0
    // Predicated region
    $region2: #{tpu_custom_call.1} parent=1 // pred_check
      _
    $region3: #{tpu_custom_call.1} parent=1 // pred_check_branch
      %10 = sbr.rel (0) target = $region5
    $region4: #{tpu_custom_call.1} parent=1 // pred_region
      _
    $region5: #{tpu_custom_call.1} parent=1 // pred_fallthru
      _
    // Predicated region
    $region6: #{tpu_custom_call.1} parent=1 // pred_check
      _
    $region7: #{tpu_custom_call.1} parent=1 // pred_check_branch
      %12 = sbr.rel (0) target = $region9
    $region8: #{tpu_custom_call.1} parent=1 // pred_region
      _
    $region9: #{tpu_custom_call.1} parent=1 // pred_fallthru
      _
    // Predicated region
    $region10: #{tpu_custom_call.1} parent=1 // pred_check
      _
    $region11: #{tpu_custom_call.1} parent=1 // pred_check_branch
      %14 = sbr.rel (0) target = $region13
    $region12: #{tpu_custom_call.1} parent=1 // pred_region
      _
    $region13: #{tpu_custom_call.1} parent=1 // pred_fallthru
      _
    %v15 = vld [vmem:[%s0] sm:$0xff]
    %v16 = vld [vmem:[%s0 + $0x8] sm:$0xff]
    %v19 = vcombine.high %v15, %v15
    %v20 = vcombine.high %v16, %v16
    %vm23 = vcmask 1043456
    %v24 = vsel %vm23, %v15, 0.0
    %v25 = vsel %vm23, %v19, 0.0
    %v26 = vadd.f32 %v24, %v25
    %27 = vadd.xlane.f32.xlu0 %v26
    %v28 = vpop.xlane.xlu0 %27
    %v29 = vsel %vm23, %v16, 0.0
    %v30 = vsel %vm23, %v20, 0.0
    %v31 = vadd.f32 %v29, %v30
    %32 = vadd.xlane.f32.xlu0 %v31
    %v33 = vpop.xlane.xlu0 %32
    %v34 = vmul.f32 %v15, %v15
    %v35 = vmul.f32 %v16, %v16
    %v38 = vcombine.high %v34, %v34
    %v39 = vcombine.high %v35, %v35
    %v42 = vsel %vm23, %v34, 0.0
    %v43 = vsel %vm23, %v38, 0.0
    %v44 = vadd.f32 %v42, %v43
    %45 = vadd.xlane.f32.xlu0 %v44
    %v46 = vpop.xlane.xlu0 %45
    %v47 = vsel %vm23, %v35, 0.0
    %v48 = vsel %vm23, %v39, 0.0
    %v49 = vadd.f32 %v47, %v48
    %50 = vadd.xlane.f32.xlu0 %v49
    %v51 = vpop.xlane.xlu0 %50
    %v52 = vsel %vm23, %v28, 0.0
    %v53 = vsel %vm23, %v33, 0.0
    %v54 = vadd.f32 %v52, %v53
    %v55 = vsel %vm23, %v46, 0.0
    %v56 = vsel %vm23, %v51, 0.0
    %v57 = vadd.f32 %v55, %v56
    %v58 = vmul.f32 %v54, 0.001953125
    %v59 = vmul.f32 %v57, 0.001953125
    %v60 = vmul.f32 %v58, %v58
    %v61 = vsub.f32 %v59, %v60
    %v62 = vmax.f32 %v61, 0.0
    %v63 = vadd.f32 %v62, 1e-05
    %v64 = vrsqrt.pop %v63
    %v65 = vld [vmem:[%s1] sm:$0xf]
    %v66 = vld [vmem:[%s1 + $0x4] sm:$0xf]
    %v67 = vmul.f32 %v64, %v65
    %v68 = vmul.f32 %v64, %v66
    %v69 = vld [vmem:[%s2] sm:$0xf]
    %v70 = vld [vmem:[%s2 + $0x4] sm:$0xf]
    %v71 = vmul.f32 %v58, %v67
    %v72 = vmul.f32 %v58, %v68
    %v73 = vsub.f32 %v69, %v71
    %v74 = vsub.f32 %v70, %v72
    %76 = vset.pattern.permute.xlu0 0
    %77 = vperm.xlu0 %76, %v67
    %v78 = vpop.permute.xlu0 %77
    %80 = vset.pattern.permute.xlu0 0
    %81 = vperm.xlu0 %80, %v68
    %v82 = vpop.permute.xlu0 %81
    %v84 = vunpack.c.l.s4 839922192
    %v85 = vunpack.c.0.s8 %v84
    %v86 = vlaneseq
    %v87 = vshrl.u32 %v86, 7
    %v88 = vsub.s32 %v85, %v87
    %v89 = vrot.slane %v78, %v88
    %v91 = vunpack.c.l.s4 839922192
    %v92 = vunpack.c.0.s8 %v91
    %v93 = vlaneseq
    %v94 = vshrl.u32 %v93, 7
    %v95 = vsub.s32 %v92, %v94
    %v96 = vrot.slane %v82, %v95
    %v99 = vmul.f32 %v15, %v89
    %v100 = vmul.f32 %v16, %v96
    %102 = vset.pattern.permute.xlu0 0
    %103 = vperm.xlu0 %102, %v73
    %v104 = vpop.permute.xlu0 %103
    %106 = vset.pattern.permute.xlu0 0
    %107 = vperm.xlu0 %106, %v74
    %v108 = vpop.permute.xlu0 %107
    %v110 = vunpack.c.l.s4 839922192
    %v111 = vunpack.c.0.s8 %v110
    %v112 = vlaneseq
    %v113 = vshrl.u32 %v112, 7
    %v114 = vsub.s32 %v111, %v113
    %v115 = vrot.slane %v104, %v114
    %v117 = vunpack.c.l.s4 839922192
    %v118 = vunpack.c.0.s8 %v117
    %v119 = vlaneseq
    %v120 = vshrl.u32 %v119, 7
    %v121 = vsub.s32 %v118, %v120
    %v122 = vrot.slane %v108, %v121
    %v125 = vadd.f32 %v99, %v115
    %v126 = vadd.f32 %v100, %v122
    %127 = vst [vmem:[#allocation2] sm:$0xff] %v125
    %128 = vst [vmem:[#allocation2 + $0x8] sm:$0xff] %v126
    // Predicated region
    $region14: #{tpu_custom_call.1} parent=1 // pred_check
      _
    $region15: #{tpu_custom_call.1} parent=1 // pred_check_branch
      %130 = sbr.rel (0) target = $region17
    $region16: #{tpu_custom_call.1} parent=1 // pred_region
      %s132 = ssub.s32 256, 256
      %133 = vsyncadd [#allocation3], %s132
      %s134 = sshll.u32 [#allocation2], 4
      %s135 = int_to_ptr.vmem [resolvable:$true] %s134
      %140 = dma.vmem_to_hbm [thread:$0]  %s135, 256, %s3, [#allocation3], 128, 128, 8
    $region17: #{tpu_custom_call.1} parent=1 // pred_fallthru
      _
    // Predicated region
    $region18: #{tpu_custom_call.1} parent=1 // pred_check
      _
    $region19: #{tpu_custom_call.1} parent=1 // pred_check_branch
      %142 = sbr.rel (0) target = $region21
    $region20: #{tpu_custom_call.1} parent=1 // pred_region
      %143 = dma.done [#allocation3], 256
    $region21: #{tpu_custom_call.1} parent=1 // pred_fallthru
      _
    %144 = vsyncpa [#allocation3], 1

</llo_original>
